<compile_context>
chip_gen: v7x
topology: tpu7x:2x2x1
jax: 0.10.0
libtpu: 0.0.40
codegen_flags: <defaults>
</compile_context>

<pallas_src>
import functools

import jax
import jax.numpy as jnp
from jax.experimental import pallas as pl
from jax.experimental.pallas import tpu as pltpu

EPS = 1e-5    # nn.BatchNorm1d default eps
LANE = 128    # TPU lane width


def _round_up(v, m):
    return (v + m - 1) // m * m


def _vmem_limits():
    """Generation-aware (budget_for_tiles, vmem_limit_bytes)."""
    try:
        cap = int(pltpu.get_tpu_info().vmem_capacity_bytes)
        if cap <= 0:
            raise ValueError
    except Exception:
        cap = 64 * 1024 * 1024              # conservative: v7x per-TC VMEM
    vmem_limit = (cap * 3) // 4             # 96 MiB on 128 MiB parts, 48 MiB on v7x
    tile_budget = (vmem_limit * 4) // 5     # headroom for compiler temporaries
    return tile_budget, vmem_limit


# ---------------------------------------------------------------------------
# Single-pass path: whole batch resident per feature slab.
# ---------------------------------------------------------------------------

def gbn_kernel(x_ref, gamma_ref, beta_ref, o_ref):
    # One (N, tc) column slab; per-feature stats over the batch axis are local
    # to the slab (columns are independent), so there is no cross-tile work.
    x = x_ref[...].astype(jnp.float32)                         # (N, tc)
    inv_n = jnp.float32(1.0 / x.shape[0])

    mean = jnp.sum(x, axis=0, keepdims=True) * inv_n           # (1, tc)
    xc = x - mean                                              # centered pass
    var = jnp.sum(xc * xc, axis=0, keepdims=True) * inv_n      # biased variance
    inv_std = jax.lax.rsqrt(var + EPS)

    scale = gamma_ref[...].astype(jnp.float32) * inv_std       # (1, tc)
    y = xc * scale + beta_ref[...].astype(jnp.float32)
    y = jnp.maximum(y, 0.0)                                    # act = ReLU
    # drop: eval-mode Dropout == identity
    o_ref[...] = y.astype(o_ref.dtype)


def _choose_main_tile(n, c, itemsize, budget):
    """Feature-tile width for the single-pass path, or None if the batch is too
    large for an (N, 128) block (the two-pass path is then required)."""
    c_round = _round_up(c, LANE)
    # Per feature column: 2 double-buffered input + 2 output pipeline buffers in
    # x's dtype plus ~3 f32-sized in-kernel temporaries, plus gamma/beta.
    per_col = n * (4 * itemsize + 3 * 4) + 4 * 4
    tc = (budget // per_col) // LANE * LANE
    if tc < LANE:
        return None
    tc = min(tc, c_round)
    if tc >= c_round and c_round >= 2 * LANE:
        # >= 2 feature blocks: both v7x TensorCores get work and in/out DMAs
        # overlap via the default double-buffered pipeline.
        tc = _round_up(pl.cdiv(c_round, 2), LANE)
    if tc >= c_round:
        tc = c          # single block covers everything: exact width, no ragged cols
    return tc


# ---------------------------------------------------------------------------
# Two-pass fallback for large N: batch axis tiled as well.
# ---------------------------------------------------------------------------

def _gbn_stats_kernel(x_ref, sum_ref, ssq_ref, shift_ref, *, n_total):
    n_idx = pl.program_id(1)
    x = x_ref[...].astype(jnp.float32)                         # (tn, tc)

    @pl.when(n_idx == 0)
    def _():
        # Per-column shift (first batch row) keeps the one-pass variance well
        # conditioned; accumulators are zero-initialised.
        shift_ref[...] = x[0:1, :]
        sum_ref[...] = jnp.zeros_like(sum_ref)
        ssq_ref[...] = jnp.zeros_like(ssq_ref)

    row = jax.lax.broadcasted_iota(jnp.int32, x.shape, 0) + n_idx * x.shape[0]
    valid = row < n_total                                      # mask ragged batch tile
    xc = jnp.where(valid, x - shift_ref[...], 0.0)
    sum_ref[...] += jnp.sum(xc, axis=0, keepdims=True)
    ssq_ref[...] += jnp.sum(xc * xc, axis=0, keepdims=True)


def _gbn_norm_kernel(x_ref, scale_ref, shift_ref, o_ref):
    x = x_ref[...].astype(jnp.float32)
    y = x * scale_ref[...] + shift_ref[...]
    o_ref[...] = jnp.maximum(y, 0.0).astype(o_ref.dtype)


def _gbn_two_pass(x, gamma, beta, vmem_limit, tile_budget, tn=None, tc=None):
    N, C = x.shape
    itemsize = x.dtype.itemsize
    c_round = _round_up(C, LANE)
    if tc is None:
        tc = min(c_round, 512)
    if tn is None:
        per_row = tc * (4 * itemsize + 3 * 4)
        tn = max(8, (tile_budget // per_row) // 8 * 8)
    tn = min(tn, _round_up(N, 8))
    nc = pl.cdiv(C, tc)
    nn = pl.cdiv(N, tn)

    # Pass 1: per-feature shifted sum / sum-of-squares (reduction over N last).
    s, ss, shift0 = pl.pallas_call(
        functools.partial(_gbn_stats_kernel, n_total=N),
        out_shape=(jax.ShapeDtypeStruct((1, C), jnp.float32),) * 3,
        grid=(nc, nn),
        in_specs=[pl.BlockSpec((tn, tc), lambda c, n: (n, c))],
        out_specs=[pl.BlockSpec((1, tc), lambda c, n: (0, c))] * 3,
        compiler_params=pltpu.CompilerParams(
            dimension_semantics=("parallel", "arbitrary"),
            vmem_limit_bytes=vmem_limit,
        ),
        cost_estimate=pl.CostEstimate(
            flops=4 * N * C, transcendentals=0,
            bytes_accessed=N * C * itemsize + 3 * C * 4,
        ),
    )(x)

    # Tiny (1, C) epilogue in plain JAX: fold BN stats + affine into scale/shift.
    n_f = jnp.float32(N)
    mean = shift0 + s / n_f
    var = jnp.maximum(ss / n_f - (s / n_f) ** 2, 0.0)
    inv_std = jax.lax.rsqrt(var + EPS)
    scale = gamma.astype(jnp.float32) * inv_std
    offset = beta.astype(jnp.float32) - mean * scale

    # Pass 2: normalize + ReLU.
    out = pl.pallas_call(
        _gbn_norm_kernel,
        out_shape=jax.ShapeDtypeStruct((N, C), x.dtype),
        grid=(nn, nc),
        in_specs=[
            pl.BlockSpec((tn, tc), lambda n, c: (n, c)),
            pl.BlockSpec((1, tc), lambda n, c: (0, c)),
            pl.BlockSpec((1, tc), lambda n, c: (0, c)),
        ],
        out_specs=pl.BlockSpec((tn, tc), lambda n, c: (n, c)),
        compiler_params=pltpu.CompilerParams(
            dimension_semantics=("parallel", "parallel"),
            vmem_limit_bytes=vmem_limit,
        ),
        cost_estimate=pl.CostEstimate(
            flops=3 * N * C, transcendentals=0,
            bytes_accessed=2 * N * C * itemsize + 2 * C * 4,
        ),
    )(x, scale, offset)
    return out


# ---------------------------------------------------------------------------
# Public wrapper.
# ---------------------------------------------------------------------------

def gbn_forward(x, gamma, beta, *, _force_two_pass=False, _tn=None, _tc=None):
    """x: (N, C); gamma, beta: (1, C).  Output dtype == x dtype (bf16 stays bf16)."""
    N, C = x.shape
    itemsize = x.dtype.itemsize
    tile_budget, vmem_limit = _vmem_limits()

    tc = None if _force_two_pass else _choose_main_tile(N, C, itemsize, tile_budget)
    if tc is None:
        # Batch too large for whole-batch feature slabs (or explicitly forced).
        return _gbn_two_pass(x, gamma, beta, vmem_limit, tile_budget, _tn, _tc)

    grid_c = pl.cdiv(C, tc)
    return pl.pallas_call(
        gbn_kernel,
        out_shape=jax.ShapeDtypeStruct((N, C), x.dtype),
        grid=(grid_c,),
        in_specs=[
            pl.BlockSpec((N, tc), lambda j: (0, j)),
            pl.BlockSpec((1, tc), lambda j: (0, j)),
            pl.BlockSpec((1, tc), lambda j: (0, j)),
        ],
        out_specs=pl.BlockSpec((N, tc), lambda j: (0, j)),
        compiler_params=pltpu.CompilerParams(
            dimension_semantics=("parallel",),
            vmem_limit_bytes=vmem_limit,
        ),
        cost_estimate=pl.CostEstimate(
            flops=7 * N * C,
            transcendentals=C,
            bytes_accessed=2 * N * C * itemsize + 2 * C * 4,
        ),
    )(x, gamma, beta)


def gbn_reference(x, gamma, beta):
    x = x.astype(jnp.float32)
    mean = jnp.mean(x, axis=0, keepdims=True)
    var = jnp.mean((x - mean) ** 2, axis=0, keepdims=True)
    y = (x - mean) * jax.lax.rsqrt(var + EPS) * gamma + beta
    return jnp.maximum(y, 0.0)


if __name__ == "__main__":
    key = jax.random.PRNGKey(0)
    kx, kg, kb, kx2, kg2, kb2 = jax.random.split(key, 6)

    # --- Small case: single-pass path (whole batch in one VMEM slab). ---
    N, C = 8, 32  # small batch, input_dim = 32
    x = jax.random.normal(kx, (N, C), dtype=jnp.float32)
    gamma = 1.0 + 0.1 * jax.random.normal(kg, (1, C), dtype=jnp.float32)
    beta = 0.1 * jax.random.normal(kb, (1, C), dtype=jnp.float32)

    out = jax.block_until_ready(gbn_forward(x, gamma, beta))
    ref = gbn_reference(x, gamma, beta)
    assert out.shape == (N, C)
    assert jnp.allclose(out, ref, atol=5e-5, rtol=1e-5), (
        float(jnp.max(jnp.abs(out - ref)))
    )

    # --- Ragged / batch-tiled two-pass path, forced at small shapes so the
    #     large-N fallback is also exercised (N and C not multiples of 8/128). ---
    N2, C2 = 37, 200
    x2 = jax.random.normal(kx2, (N2, C2), dtype=jnp.float32)
    gamma2 = 1.0 + 0.1 * jax.random.normal(kg2, (1, C2), dtype=jnp.float32)
    beta2 = 0.1 * jax.random.normal(kb2, (1, C2), dtype=jnp.float32)

    out2 = jax.block_until_ready(
        gbn_forward(x2, gamma2, beta2, _force_two_pass=True, _tn=16, _tc=128)
    )
    ref2 = gbn_reference(x2, gamma2, beta2)
    assert out2.shape == (N2, C2)
    assert jnp.allclose(out2, ref2, atol=5e-5, rtol=1e-5), (
        float(jnp.max(jnp.abs(out2 - ref2)))
    )

    print("KERNEL_OK")
</pallas_src>

<mosaic_0001>
module attributes {stable_mosaic.version = 11 : i64} {
  func.func @gbn_kernel(%arg0: i32, %arg1: memref<8x32xf32, #tpu.memory_space<vmem>>, %arg2: memref<1x32xf32, #tpu.memory_space<vmem>>, %arg3: memref<1x32xf32, #tpu.memory_space<vmem>>, %arg4: memref<8x32xf32, #tpu.memory_space<vmem>>) attributes {dimension_semantics = [#tpu.dimension_semantics<parallel>], iteration_bounds = array<i64: 1>, scalar_prefetch = 0 : i64, scratch_operands = 0 : i64, tpu.core_type = #tpu.core_type<tc>, window_params = [{transform_indices = @transform_0, window_bounds = array<i64: 8, 32>}, {transform_indices = @transform_1, window_bounds = array<i64: 1, 32>}, {transform_indices = @transform_2, window_bounds = array<i64: 1, 32>}, {transform_indices = @transform_3, window_bounds = array<i64: 8, 32>}]} {
    %c0 = arith.constant 0 : index
    %c0_0 = arith.constant 0 : index
    %0 = vector.load %arg1[%c0, %c0_0] : memref<8x32xf32, #tpu.memory_space<vmem>>, vector<8x32xf32>
    %cst = arith.constant dense<0.000000e+00> : vector<32xf32>
    %1 = vector.multi_reduction <add>, %0, %cst [0] : vector<8x32xf32> to vector<32xf32>
    %2 = vector.shape_cast %1 : vector<32xf32> to vector<1x32xf32>
    %cst_1 = arith.constant 1.250000e-01 : f32
    %3 = vector.broadcast %cst_1 : f32 to vector<1x32xf32>
    %4 = arith.mulf %2, %3 : vector<1x32xf32>
    %5 = vector.broadcast %4 : vector<1x32xf32> to vector<8x32xf32>
    %6 = arith.subf %0, %5 : vector<8x32xf32>
    %7 = arith.mulf %6, %6 : vector<8x32xf32>
    %cst_2 = arith.constant dense<0.000000e+00> : vector<32xf32>
    %8 = vector.multi_reduction <add>, %7, %cst_2 [0] : vector<8x32xf32> to vector<32xf32>
    %9 = vector.shape_cast %8 : vector<32xf32> to vector<1x32xf32>
    %cst_3 = arith.constant 1.250000e-01 : f32
    %10 = vector.broadcast %cst_3 : f32 to vector<1x32xf32>
    %11 = arith.mulf %9, %10 : vector<1x32xf32>
    %cst_4 = arith.constant 9.99999974E-6 : f32
    %12 = vector.broadcast %cst_4 : f32 to vector<1x32xf32>
    %13 = arith.addf %11, %12 : vector<1x32xf32>
    %14 = math.rsqrt %13 : vector<1x32xf32>
    %c0_5 = arith.constant 0 : index
    %c0_6 = arith.constant 0 : index
    %15 = vector.load %arg2[%c0_5, %c0_6] : memref<1x32xf32, #tpu.memory_space<vmem>>, vector<1x32xf32>
    %16 = arith.mulf %15, %14 : vector<1x32xf32>
    %17 = vector.broadcast %16 : vector<1x32xf32> to vector<8x32xf32>
    %18 = arith.mulf %6, %17 : vector<8x32xf32>
    %c0_7 = arith.constant 0 : index
    %c0_8 = arith.constant 0 : index
    %19 = vector.load %arg3[%c0_7, %c0_8] : memref<1x32xf32, #tpu.memory_space<vmem>>, vector<1x32xf32>
    %20 = vector.broadcast %19 : vector<1x32xf32> to vector<8x32xf32>
    %21 = arith.addf %18, %20 : vector<8x32xf32>
    %cst_9 = arith.constant 0.000000e+00 : f32
    %22 = vector.broadcast %cst_9 : f32 to vector<8x32xf32>
    %23 = arith.maximumf %21, %22 : vector<8x32xf32>
    %c0_10 = arith.constant 0 : index
    %c0_11 = arith.constant 0 : index
    %24 = vector.load %arg4[%c0_10, %c0_11] : memref<8x32xf32, #tpu.memory_space<vmem>>, vector<8x32xf32>
    tpu.vector_store %arg4[%c0_10, %c0_11], %23 {strides = array<i32>} : memref<8x32xf32, #tpu.memory_space<vmem>>, vector<8x32xf32>,
    return
  }
  func.func @transform_0(%arg0: i32) -> (i32, i32) {
    %c0_i32 = arith.constant 0 : i32
    %c0_i32_0 = arith.constant 0 : i32
    return %c0_i32, %arg0 : i32, i32
  }
  func.func @transform_1(%arg0: i32) -> (i32, i32) {
    %c0_i32 = arith.constant 0 : i32
    %c0_i32_0 = arith.constant 0 : i32
    return %c0_i32, %arg0 : i32, i32
  }
  func.func @transform_2(%arg0: i32) -> (i32, i32) {
    %c0_i32 = arith.constant 0 : i32
    %c0_i32_0 = arith.constant 0 : i32
    return %c0_i32, %arg0 : i32, i32
  }
  func.func @transform_3(%arg0: i32) -> (i32, i32) {
    %c0_i32 = arith.constant 0 : i32
    %c0_i32_0 = arith.constant 0 : i32
    return %c0_i32, %arg0 : i32, i32
  }
}

</mosaic_0001>

<llo_original>
// kernel: tpu_custom_call.1
$region0: #{tpu_custom_call.1}
  #allocation0 [shape = 'u32[]', space=smem, size = 0x4, offset = 0x4, fixed_abs, tag = 'smem constant byte address 0x4 - core index']
  #allocation1 [shape = 'u32[144,128]{1,0:T(1,128)}', space=vmem, size = 0x12000, scoped, tag = 'internal scratch']
  %s0 = inlined_call_operand.hbm [shape: f32[8,32], index: 0, kind: input, shape index: {}]
  %s1 = inlined_call_operand.vmem [shape: f32[1,32], index: 1, kind: input, shape index: {}]
  %s2 = inlined_call_operand.vmem [shape: f32[1,32], index: 2, kind: input, shape index: {}]
  %s3 = inlined_call_operand.hbm [shape: f32[8,32], index: 3, kind: output, shape index: {}]
  %s4 = sld [smem:[#allocation0]]
  $region26: #{tpu_custom_call.1} parent=0
    _
  %s6 = ssub.s32 1, %s4
  %s7 = scalar_select 0, %s6, %s4
  $region1: #{tpu_custom_call.1} parent=0
    #allocation2 [shape = 'u8[4096]{0}', space=vmem, size = 0x1000, scoped, tag = 'input window, operand 0, single buffered']
    #allocation3 [shape = 's32[1]{0}', space=sflag, size = 0x4, scoped, tag = 'scoped memory for tpu_custom_call.1']
    #allocation4 [shape = 's32[1]{0}', space=sflag, size = 0x4, scoped, tag = 'scoped memory for tpu_custom_call.1']
    #allocation5 [shape = 'u8[4096]{0}', space=vmem, size = 0x1000, scoped, tag = 'output window, operand 0, single buffered']
    %8 = vsyncpa [#allocation3], 0
    %9 = vsyncpa [#allocation4], 0
    // Predicated region
    $region2: #{tpu_custom_call.1} parent=1 // pred_check
      _
    $region3: #{tpu_custom_call.1} parent=1 // pred_check_branch
      %11 = sbr.rel (0) target = $region5
    $region4: #{tpu_custom_call.1} parent=1 // pred_region
      %s13 = ssub.s32 128, 128
      %14 = vsyncadd [#allocation3], %s13
      %s16 = sshll.u32 [#allocation2], 4
      %s17 = int_to_ptr.vmem [resolvable:$true] %s16
      %19 = dma.hbm_to_vmem [thread:$0]  %s0, 128, %s17, [#allocation3]
    $region5: #{tpu_custom_call.1} parent=1 // pred_fallthru
      _
    // Predicated region
    $region6: #{tpu_custom_call.1} parent=1 // pred_check
      _
    $region7: #{tpu_custom_call.1} parent=1 // pred_check_branch
      %21 = sbr.rel (0) target = $region9
    $region8: #{tpu_custom_call.1} parent=1 // pred_region
      _
    $region9: #{tpu_custom_call.1} parent=1 // pred_fallthru
      _
    // Predicated region
    $region10: #{tpu_custom_call.1} parent=1 // pred_check
      _
    $region11: #{tpu_custom_call.1} parent=1 // pred_check_branch
      %23 = sbr.rel (0) target = $region13
    $region12: #{tpu_custom_call.1} parent=1 // pred_region
      _
    $region13: #{tpu_custom_call.1} parent=1 // pred_fallthru
      _
    // Predicated region
    $region14: #{tpu_custom_call.1} parent=1 // pred_check
      _
    $region15: #{tpu_custom_call.1} parent=1 // pred_check_branch
      %25 = sbr.rel (0) target = $region17
    $region16: #{tpu_custom_call.1} parent=1 // pred_region
      %26 = dma.done [#allocation3], 128
    $region17: #{tpu_custom_call.1} parent=1 // pred_fallthru
      _
    %v27 = vld [vmem:[#allocation2] sm:$0xff]
    %vm28 = vcmask 261120
    %v29 = vsel %vm28, %v27, 0.0
    %v30 = vrot.slane %v29, 4
    %v31 = vadd.f32 %v29, %v30
    %v32 = vrot.slane %v31, 2
    %v33 = vadd.f32 %v31, %v32
    %v34 = vrot.slane %v33, 1
    %v35 = vadd.f32 %v33, %v34
    %v36 = vmul.f32 %v35, 0.125
    %v37 = vsub.f32 %v27, %v36
    %v38 = vmul.f32 %v37, %v37
    %v39 = vsel %vm28, %v38, 0.0
    %v40 = vrot.slane %v39, 4
    %v41 = vadd.f32 %v39, %v40
    %v42 = vrot.slane %v41, 2
    %v43 = vadd.f32 %v41, %v42
    %v44 = vrot.slane %v43, 1
    %v45 = vadd.f32 %v43, %v44
    %v46 = vmul.f32 %v45, 0.125
    %v47 = vadd.f32 %v46, 1e-05
    %v48 = vrsqrt.pop %v47
    %v49 = vld [vmem:[%s1] sm:$0x1]
    %v50 = vmul.f32 %v49, %v48
    %v52 = vlaneseq
    %v53 = vshrl.u32 %v52, 7
    %v54 = vsub.s32 0, %v53
    %v55 = vrot.slane %v50, %v54
    %v57 = vmul.f32 %v37, %v55
    %v58 = vld [vmem:[%s2] sm:$0x1]
    %v60 = vlaneseq
    %v61 = vshrl.u32 %v60, 7
    %v62 = vsub.s32 0, %v61
    %v63 = vrot.slane %v58, %v62
    %v65 = vadd.f32 %v57, %v63
    %v66 = vmax.f32 %v65, 0.0
    %67 = vst.msk [vmem:[#allocation5] sm:$0xff] %vm28, %v66
    // Predicated region
    $region18: #{tpu_custom_call.1} parent=1 // pred_check
      _
    $region19: #{tpu_custom_call.1} parent=1 // pred_check_branch
      %69 = sbr.rel (0) target = $region21
    $region20: #{tpu_custom_call.1} parent=1 // pred_region
      %s71 = ssub.s32 128, 128
      %72 = vsyncadd [#allocation4], %s71
      %s74 = sshll.u32 [#allocation5], 4
      %s75 = int_to_ptr.vmem [resolvable:$true] %s74
      %77 = dma.vmem_to_hbm [thread:$0]  %s75, 128, %s3, [#allocation4]
    $region21: #{tpu_custom_call.1} parent=1 // pred_fallthru
      _
    // Predicated region
    $region22: #{tpu_custom_call.1} parent=1 // pred_check
      _
    $region23: #{tpu_custom_call.1} parent=1 // pred_check_branch
      %79 = sbr.rel (0) target = $region25
    $region24: #{tpu_custom_call.1} parent=1 // pred_region
      %80 = dma.done [#allocation4], 128
    $region25: #{tpu_custom_call.1} parent=1 // pred_fallthru
      _
    %81 = vsyncpa [#allocation3], 1
    %82 = vsyncpa [#allocation4], 1

</llo_original>
